<compile_context>
chip_gen: v5e
topology: v5e:2x2
jax: 0.10.0
libtpu: 0.0.40
codegen_flags: <defaults>
</compile_context>

<pallas_src>
import math

import jax
import jax.numpy as jnp
from jax.experimental import pallas as pl
from jax.experimental.pallas import tpu as pltpu


# Gate order along the fused 4H axis: [input | forget | candidate | output].
# The candidate columns of the fused params are pre-scaled by 2 (see
# fuse_lstm_params), so tanh(a_c) is recovered as 2*sigmoid(2*a_c) - 1.


def _gates_to_state(preact, c, H):
    """(B, 4H) pre-activations + previous cell state -> (hy, cy)."""
    s = jax.nn.sigmoid(preact)                 # one full-vreg EUP push
    input_gate = s[:, 0 * H:1 * H]
    forget_gate = s[:, 1 * H:2 * H]
    c_tilda = 2.0 * s[:, 2 * H:3 * H] - 1.0    # == tanh(original candidate preact)
    output_gate = s[:, 3 * H:4 * H]
    cy = forget_gate * c + input_gate * c_tilda
    hy = output_gate * jnp.tanh(cy)
    return hy, cy


# ---------------------------------------------------------------------------
# Sequence kernel: whole time loop inside one pallas_call (grid=(T,)).
# ---------------------------------------------------------------------------
def _lstm_seq_kernel(xw_ref, wh_ref, h0_ref, c0_ref, out_ref, h_sc, c_sc):
    H = h_sc.shape[-1]
    t = pl.program_id(0)

    @pl.when(t == 0)
    def _():
        h_sc[...] = h0_ref[...].astype(jnp.float32)
        c_sc[...] = c0_ref[...].astype(jnp.float32)

    h = h_sc[...]
    c = c_sc[...]

    # x-path (x@W_x + b) was precomputed for all T outside the kernel; only the
    # recurrent matmul runs in the sequential loop.  f32 MXU accumulation.
    preact = xw_ref[...] + jnp.dot(h, wh_ref[...],
                                   preferred_element_type=jnp.float32)

    hy, cy = _gates_to_state(preact, c, H)

    h_sc[...] = hy
    c_sc[...] = cy
    # Packed (B, 2H) store: [hy | cy] for this timestep.
    out_ref[...] = jnp.concatenate([hy, cy], axis=-1).astype(out_ref.dtype)


# ---------------------------------------------------------------------------
# Single-step kernel: one fused matmul  [x|h] @ [W_x; W_h] + b.
# ---------------------------------------------------------------------------
def _lstm_cell_kernel(xh_ref, w_ref, b_ref, c_ref, out_ref):
    H = c_ref.shape[-1]
    preact = (jnp.dot(xh_ref[...], w_ref[...],
                      preferred_element_type=jnp.float32)
              + b_ref[...])                    # (1, 4H) broadcasts over batch
    hy, cy = _gates_to_state(preact, c_ref[...], H)
    out_ref[...] = jnp.concatenate([hy, cy], axis=-1).astype(out_ref.dtype)


def fuse_lstm_params(params):
    """Fuse per-gate weights/biases ONCE (do NOT call per step).

    Returns:
      W_x  : (I, 4H)      x-path weights   (candidate columns pre-scaled by 2)
      W_h  : (H, 4H)      h-path weights   (candidate columns pre-scaled by 2)
      W_xh : (I+H, 4H)    stacked [W_x; W_h] for the single-step kernel
      b    : (1, 4H)      fused bias       (candidate columns pre-scaled by 2)
    Gate order along 4H: [i, f, c, o].
    """
    W_x = jnp.concatenate(
        [params["W_xi"], params["W_xf"], params["W_xc"], params["W_xo"]], axis=1)
    W_h = jnp.concatenate(
        [params["W_hi"], params["W_hf"], params["W_hc"], params["W_ho"]], axis=1)
    b = jnp.concatenate(
        [params["b_i"], params["b_f"], params["b_c"], params["b_o"]], axis=0
    ).reshape(1, -1)

    H = params["W_hi"].shape[0]
    # Pre-scale candidate columns by 2 so the kernel can use a single full-vreg
    # sigmoid and recover tanh via 2*sigmoid(2a)-1.
    scale = jnp.concatenate(
        [jnp.ones((1, H)), jnp.ones((1, H)), jnp.full((1, H), 2.0),
         jnp.ones((1, H))], axis=1).astype(W_x.dtype)
    W_x = W_x * scale
    W_h = W_h * scale
    b = b * scale

    return {"W_x": W_x, "W_h": W_h,
            "W_xh": jnp.concatenate([W_x, W_h], axis=0), "b": b}


@jax.jit
def naive_lstm_cell(x, h, c, fused_params):
    """One LSTM cell step (matches NaiveLSTMCell.forward).

    x: (B, I), h: (B, H), c: (B, H)  (pass zeros for the module's hidden=None).
    Returns (hy, cy), both (B, H).
    """
    B = x.shape[0]
    H = fused_params["W_h"].shape[0]
    xh = jnp.concatenate([x, h], axis=-1)      # (B, I+H)
    vmem = pl.BlockSpec(memory_space=pltpu.MemorySpace.VMEM)

    out = pl.pallas_call(
        _lstm_cell_kernel,
        out_shape=jax.ShapeDtypeStruct((B, 2 * H), x.dtype),
        in_specs=[vmem, vmem, vmem, vmem],
        out_specs=vmem,
    )(xh, fused_params["W_xh"], fused_params["b"], c)
    return out[:, :H], out[:, H:]


@jax.jit
def naive_lstm_sequence(x_seq, h0, c0, fused_params):
    """Apply the cell over a whole sequence inside ONE pallas_call.

    x_seq: (T, B, I), h0/c0: (B, H).
    Returns (h_seq, c_seq), each (T, B, H).
    """
    T, B, _ = x_seq.shape
    H = fused_params["W_h"].shape[0]

    # x-path pre-GEMM over the whole sequence: one large MXU-friendly matmul,
    # removes one matmul + one (B, 4H) add from the sequential loop.
    xw = (x_seq.reshape(T * B, -1) @ fused_params["W_x"]
          + fused_params["b"]).reshape(T, B, 4 * H)

    out = pl.pallas_call(
        _lstm_seq_kernel,
        out_shape=jax.ShapeDtypeStruct((T, B, 2 * H), x_seq.dtype),
        grid=(T,),
        in_specs=[
            # per-step slice of the precomputed x-path pre-activations
            pl.BlockSpec((None, B, 4 * H), lambda t: (t, 0, 0)),
            # W_h: constant index_map -> loaded once, stays VMEM-resident
            pl.BlockSpec((H, 4 * H), lambda t: (0, 0)),
            pl.BlockSpec((B, H), lambda t: (0, 0)),   # h0 (read at t==0 only)
            pl.BlockSpec((B, H), lambda t: (0, 0)),   # c0 (read at t==0 only)
        ],
        out_specs=pl.BlockSpec((None, B, 2 * H), lambda t: (t, 0, 0)),
        scratch_shapes=[pltpu.VMEM((B, H), jnp.float32),   # h carry
                        pltpu.VMEM((B, H), jnp.float32)],  # c carry
        compiler_params=pltpu.CompilerParams(
            dimension_semantics=("arbitrary",)),
    )(xw, fused_params["W_h"], h0, c0)

    return out[..., :H], out[..., H:]


# ---------------------------------------------------------------------------
# Init + pure-JAX reference (exactly mirrors the PyTorch forward).
# ---------------------------------------------------------------------------
def _init_params(key, input_size, hidden_size, dtype=jnp.float32):
    stdv = 1.0 / math.sqrt(hidden_size)
    names_shapes = [
        ("W_xi", (input_size, hidden_size)), ("W_hi", (hidden_size, hidden_size)),
        ("b_i", (hidden_size,)),
        ("W_xf", (input_size, hidden_size)), ("W_hf", (hidden_size, hidden_size)),
        ("b_f", (hidden_size,)),
        ("W_xc", (input_size, hidden_size)), ("W_hc", (hidden_size, hidden_size)),
        ("b_c", (hidden_size,)),
        ("W_xo", (input_size, hidden_size)), ("W_ho", (hidden_size, hidden_size)),
        ("b_o", (hidden_size,)),
    ]
    keys = jax.random.split(key, len(names_shapes))
    return {
        name: jax.random.uniform(k, shape, dtype=dtype, minval=-stdv, maxval=stdv)
        for k, (name, shape) in zip(keys, names_shapes)
    }


def _reference_lstm_cell(x, h, c, p):
    i = jax.nn.sigmoid(x @ p["W_xi"] + h @ p["W_hi"] + p["b_i"])
    f = jax.nn.sigmoid(x @ p["W_xf"] + h @ p["W_hf"] + p["b_f"])
    o = jax.nn.sigmoid(x @ p["W_xo"] + h @ p["W_ho"] + p["b_o"])
    ct = jnp.tanh(x @ p["W_xc"] + h @ p["W_hc"] + p["b_c"])
    cy = f * c + i * ct
    hy = o * jnp.tanh(cy)
    return hy, cy


def _reference_lstm_sequence(x_seq, h0, c0, p):
    def step(carry, x):
        h, c = carry
        hy, cy = _reference_lstm_cell(x, h, c, p)
        return (hy, cy), (hy, cy)
    _, (h_seq, c_seq) = jax.lax.scan(step, (h0, c0), x_seq)
    return h_seq, c_seq


if __name__ == "__main__":
    seq_len = 8
    batch = 8
    input_size = 16
    hidden_size = 32

    root = jax.random.PRNGKey(0)
    k_params, k_x, k_h, k_c = jax.random.split(root, 4)

    params = _init_params(k_params, input_size, hidden_size)
    fused = fuse_lstm_params(params)   # fused once, reused across all steps

    x_seq = jax.random.normal(k_x, (seq_len, batch, input_size), dtype=jnp.float32)
    # The module's hidden=None defaults h, c to zeros; exercise the general
    # path with nonzero state here.
    h0 = jax.random.normal(k_h, (batch, hidden_size), dtype=jnp.float32)
    c0 = jax.random.normal(k_c, (batch, hidden_size), dtype=jnp.float32)

    # --- single-step kernel (exact module semantics) ---
    hy, cy = naive_lstm_cell(x_seq[0], h0, c0, fused)
    jax.block_until_ready((hy, cy))
    hy_ref, cy_ref = _reference_lstm_cell(x_seq[0], h0, c0, params)
    assert jnp.allclose(hy, hy_ref, atol=2e-4, rtol=2e-4), "single-step hy mismatch"
    assert jnp.allclose(cy, cy_ref, atol=2e-4, rtol=2e-4), "single-step cy mismatch"

    # --- sequence kernel (time loop folded into the grid) ---
    h_seq, c_seq = naive_lstm_sequence(x_seq, h0, c0, fused)
    jax.block_until_ready((h_seq, c_seq))
    h_seq_ref, c_seq_ref = _reference_lstm_sequence(x_seq, h0, c0, params)
    assert jnp.allclose(h_seq, h_seq_ref, atol=2e-4, rtol=2e-4), "sequence h mismatch"
    assert jnp.allclose(c_seq, c_seq_ref, atol=2e-4, rtol=2e-4), "sequence c mismatch"

    print("KERNEL_OK")
</pallas_src>

<mosaic_0001>
module attributes {stable_mosaic.version = 11 : i64} {
  func.func @_lstm_cell_kernel(%arg0: memref<8x48xf32, #tpu.memory_space<vmem>>, %arg1: memref<48x128xf32, #tpu.memory_space<vmem>>, %arg2: memref<1x128xf32, #tpu.memory_space<vmem>>, %arg3: memref<8x32xf32, #tpu.memory_space<vmem>>, %arg4: memref<8x64xf32, #tpu.memory_space<vmem>>) attributes {dimension_semantics = [], scalar_prefetch = 0 : i64, scratch_operands = 0 : i64, tpu.core_type = #tpu.core_type<tc>} {
    %c0 = arith.constant 0 : index
    %c0_0 = arith.constant 0 : index
    %0 = vector.load %arg0[%c0, %c0_0] : memref<8x48xf32, #tpu.memory_space<vmem>>, vector<8x48xf32>
    %c0_1 = arith.constant 0 : index
    %c0_2 = arith.constant 0 : index
    %1 = vector.load %arg1[%c0_1, %c0_2] : memref<48x128xf32, #tpu.memory_space<vmem>>, vector<48x128xf32>
    %cst = arith.constant dense<0.000000e+00> : vector<8x128xf32>
    %2 = tpu.matmul %0, %1, %cst {dimension_numbers = #tpu.dot_dimension_numbers<[1], [0], [0], [1], [0, 0, 1, 1], [], []>} : vector<8x48xf32>, vector<48x128xf32>, vector<8x128xf32> -> vector<8x128xf32>
    %c0_3 = arith.constant 0 : index
    %c0_4 = arith.constant 0 : index
    %3 = vector.load %arg2[%c0_3, %c0_4] : memref<1x128xf32, #tpu.memory_space<vmem>>, vector<1x128xf32>
    %4 = vector.broadcast %3 : vector<1x128xf32> to vector<8x128xf32>
    %5 = arith.addf %2, %4 : vector<8x128xf32>
    %c0_5 = arith.constant 0 : index
    %c0_6 = arith.constant 0 : index
    %6 = vector.load %arg3[%c0_5, %c0_6] : memref<8x32xf32, #tpu.memory_space<vmem>>, vector<8x32xf32>
    %7 = arith.negf %5 : vector<8x128xf32>
    %8 = math.exp %7 : vector<8x128xf32>
    %cst_7 = arith.constant 1.000000e+00 : f32
    %9 = vector.broadcast %cst_7 : f32 to vector<8x128xf32>
    %10 = arith.addf %9, %8 : vector<8x128xf32>
    %11 = arith.divf %9, %10 : vector<8x128xf32>
    %12 = vector.extract_strided_slice %11 {offsets = [0, 0], sizes = [8, 32], strides = [1, 1]} : vector<8x128xf32> to vector<8x32xf32>
    %13 = vector.extract_strided_slice %11 {offsets = [0, 32], sizes = [8, 32], strides = [1, 1]} : vector<8x128xf32> to vector<8x32xf32>
    %14 = vector.extract_strided_slice %11 {offsets = [0, 64], sizes = [8, 32], strides = [1, 1]} : vector<8x128xf32> to vector<8x32xf32>
    %cst_8 = arith.constant 2.000000e+00 : f32
    %15 = vector.broadcast %cst_8 : f32 to vector<8x32xf32>
    %16 = arith.mulf %15, %14 : vector<8x32xf32>
    %cst_9 = arith.constant 1.000000e+00 : f32
    %17 = vector.broadcast %cst_9 : f32 to vector<8x32xf32>
    %18 = arith.subf %16, %17 : vector<8x32xf32>
    %19 = vector.extract_strided_slice %11 {offsets = [0, 96], sizes = [8, 32], strides = [1, 1]} : vector<8x128xf32> to vector<8x32xf32>
    %20 = arith.mulf %13, %6 : vector<8x32xf32>
    %21 = arith.mulf %12, %18 : vector<8x32xf32>
    %22 = arith.addf %20, %21 : vector<8x32xf32>
    %23 = math.tanh %22 : vector<8x32xf32>
    %24 = arith.mulf %19, %23 : vector<8x32xf32>
    %25 = tpu.concatenate %24, %22 in 1 : vector<8x32xf32>, vector<8x32xf32> -> vector<8x64xf32>
    %c0_10 = arith.constant 0 : index
    %c0_11 = arith.constant 0 : index
    %26 = vector.load %arg4[%c0_10, %c0_11] : memref<8x64xf32, #tpu.memory_space<vmem>>, vector<8x64xf32>
    tpu.vector_store %arg4[%c0_10, %c0_11], %25 {strides = array<i32>} : memref<8x64xf32, #tpu.memory_space<vmem>>, vector<8x64xf32>,
    return
  }
}

</mosaic_0001>

<llo_original>
// kernel: naive_lstm_cell.1
$region0: #{naive_lstm_cell.1}
  #allocation0 [shape = 'u32[]', space=smem, size = 0x4, offset = 0x4, fixed_abs, tag = 'smem constant byte address 0x4 - core index']
  #allocation1 [shape = 'u32[72,128]{1,0:T(1,128)}', space=vmem, size = 0x9000, scoped, tag = 'internal scratch']
  %s0 = inlined_call_operand.vmem [shape: f32[8,48], index: 0, kind: input, shape index: {}]
  %s1 = inlined_call_operand.hbm [shape: f32[48,128], index: 1, kind: input, shape index: {}]
  %s2 = inlined_call_operand.vmem [shape: f32[1,128], index: 2, kind: input, shape index: {}]
  %s3 = inlined_call_operand.vmem [shape: f32[8,32], index: 3, kind: input, shape index: {}]
  %s4 = inlined_call_operand.vmem [shape: f32[8,64], index: 4, kind: output, shape index: {}]
  %s5 = sld [smem:[#allocation0]]
  $region30: #{naive_lstm_cell.1} parent=0
    _
  %s7 = ssub.s32 1, %s5
  %s8 = scalar_select 0, %s7, %s5
  $region1: #{naive_lstm_cell.1} parent=0
    #allocation2 [shape = 'u8[24576]{0}', space=vmem, size = 0x6000, scoped, tag = 'input window, operand 1, single buffered']
    #allocation3 [shape = 's32[1]{0}', space=sflag, size = 0x4, scoped, tag = 'scoped memory for naive_lstm_cell.1']
    %9 = vsyncpa [#allocation3], 0
    // Predicated region
    $region2: #{naive_lstm_cell.1} parent=1 // pred_check
      _
    $region3: #{naive_lstm_cell.1} parent=1 // pred_check_branch
      %11 = sbr.rel (0) target = $region5
    $region4: #{naive_lstm_cell.1} parent=1 // pred_region
      _
    $region5: #{naive_lstm_cell.1} parent=1 // pred_fallthru
      _
    // Predicated region
    $region6: #{naive_lstm_cell.1} parent=1 // pred_check
      _
    $region7: #{naive_lstm_cell.1} parent=1 // pred_check_branch
      %13 = sbr.rel (0) target = $region9
    $region8: #{naive_lstm_cell.1} parent=1 // pred_region
      %15 = vsyncadd [#allocation3], 0
      %s16 = sshll.u32 %s1, 4
      %s17 = int_to_ptr.hbm [resolvable:$true] %s16
      %s18 = sshll.u32 [#allocation2], 4
      %s19 = int_to_ptr.vmem [resolvable:$true] %s18
      %24 = dma.hbm_to_vmem [thread:$0]  %s17, 768, %s19, [#allocation3], 128, 128, 8
    $region9: #{naive_lstm_cell.1} parent=1 // pred_fallthru
      _
    // Predicated region
    $region10: #{naive_lstm_cell.1} parent=1 // pred_check
      _
    $region11: #{naive_lstm_cell.1} parent=1 // pred_check_branch
      %26 = sbr.rel (0) target = $region13
    $region12: #{naive_lstm_cell.1} parent=1 // pred_region
      _
    $region13: #{naive_lstm_cell.1} parent=1 // pred_fallthru
      _
    // Predicated region
    $region14: #{naive_lstm_cell.1} parent=1 // pred_check
      _
    $region15: #{naive_lstm_cell.1} parent=1 // pred_check_branch
      %28 = sbr.rel (0) target = $region17
    $region16: #{naive_lstm_cell.1} parent=1 // pred_region
      _
    $region17: #{naive_lstm_cell.1} parent=1 // pred_fallthru
      _
    // Predicated region
    $region18: #{naive_lstm_cell.1} parent=1 // pred_check
      _
    $region19: #{naive_lstm_cell.1} parent=1 // pred_check_branch
      %30 = sbr.rel (0) target = $region21
    $region20: #{naive_lstm_cell.1} parent=1 // pred_region
      %32 = dma.done [#allocation3], 768
    $region21: #{naive_lstm_cell.1} parent=1 // pred_fallthru
      _
    %v33 = vld [vmem:[%s0] sm:$0xff]
    %v34 = vld [vmem:[#allocation2] sm:$0xff]
    %v35 = vld [vmem:[#allocation2 + $0x8] sm:$0xff]
    %v36 = vld [vmem:[#allocation2 + $0x10] sm:$0xff]
    %v37 = vld [vmem:[#allocation2 + $0x18] sm:$0xff]
    %v38 = vld [vmem:[#allocation2 + $0x20] sm:$0xff]
    %v39 = vld [vmem:[#allocation2 + $0x28] sm:$0xff]
    %v40 = vld [vmem:[%s2] sm:$0x1]
    %v42 = vperm.slane %v40, 0
    %vm44 = vcmask 392192
    %v46 = vsel %vm44, %v33, 0
    %48 = vmatpush.msra.mxu0 0.0
    %49 = vmatpush.msra.mxu0 0.0
    %50 = vmatpush.msra.mxu0 0.0
    %51 = vmatpush.msra.mxu0 0.0
    %52 = vmatpush.msra.mxu0 0.0
    %53 = vmatpush.msra.mxu0 0.0
    %54 = vmatpush.msra.mxu0 0.0
    %55 = vmatpush.msra.mxu0 0.0
    %56 = vmatpush.msra.mxu0 0.0
    %57 = vmatpush.msra.mxu0 0.0
    %58 = vmatpush.msra.mxu0 %v39
    %59 = vmatpush.msra.mxu0 %v38
    %60 = vmatpush.msra.mxu0 %v37
    %61 = vmatpush.msra.mxu0 %v36
    %62 = vmatpush.msra.mxu0 %v35
    %63 = vmatpush.msra.mxu0 %v34
    %64 = vmatmul.f32.gmra.mxu0 %v46
    %v65 = vpop.f32.mrf.mxu0
    %v66 = vadd.f32 %v42, %v65
    %67 = vdwg.mxu0
    %v68 = vld [vmem:[%s3] sm:$0xff]
    %v69 = vxor.u32 %v66, 2147483648
    %v70 = vmul.f32 %v69, 1.442695
    %v71 = vpow.pop %v70
    %v72 = vadd.f32 %v71, 1.0
    %v73 = vrcp.pop %v72
    %v74 = vmul.f32 %v72, %v73
    %v75 = vsub.f32 1.0, %v74
    %v76 = vmul.f32 %v73, %v75
    %v77 = vadd.f32 %v73, %v76
    %vm78 = vweird.f32 %v72
    %vm79 = vweird.f32 %v73
    %vm80 = vmor %vm78, %vm79
    %v81 = vsel %vm80, %v73, %v77
    %v82 = vand.u32 2147483647, %v72
    %vm83 = vcmp.eq.f32.partialorder %v82, 8.507059e+37
    %v84 = vand.u32 %v72, 2147483648
    %v85 = vor.u32 1.1754944e-38, %v84
    %v86 = vsel %vm83, %v85, %v81
    %v87 = vmul.f32 1.0, %v86
    %v88 = vmul.f32 %v87, 2.0
    %v89 = vsub.f32 %v88, 1.0
    %91 = vrot.lane.b32.xlu0 %v68, 32
    %v92 = vpop.permute.xlu0 %91
    %v94 = vmul.f32 %v87, %v92
    %96 = vrot.lane.b32.xlu0 %v89, 64
    %v97 = vpop.permute.xlu0 %96
    %v99 = vmul.f32 %v87, %v97
    %101 = vrot.lane.b32.xlu0 %v99, 32
    %v102 = vpop.permute.xlu0 %101
    %v104 = vadd.f32 %v94, %v102
    %v105 = vtanh.pop %v104
    %107 = vrot.lane.b32.xlu0 %v105, 64
    %v108 = vpop.permute.xlu0 %107
    %v110 = vmul.f32 %v87, %v108
    %112 = vrot.lane.b32.xlu0 %v110, 32
    %v113 = vpop.permute.xlu0 %112
    %vm115 = vcmask 261120
    %v116 = vsel %vm115, %v113, %v104
    %vm117 = vcmask 523264
    %118 = vst.msk [vmem:[%s4] sm:$0xff] %vm117, %v116
    // Predicated region
    $region22: #{naive_lstm_cell.1} parent=1 // pred_check
      _
    $region23: #{naive_lstm_cell.1} parent=1 // pred_check_branch
      %120 = sbr.rel (0) target = $region25
    $region24: #{naive_lstm_cell.1} parent=1 // pred_region
      _
    $region25: #{naive_lstm_cell.1} parent=1 // pred_fallthru
      _
    // Predicated region
    $region26: #{naive_lstm_cell.1} parent=1 // pred_check
      _
    $region27: #{naive_lstm_cell.1} parent=1 // pred_check_branch
      %122 = sbr.rel (0) target = $region29
    $region28: #{naive_lstm_cell.1} parent=1 // pred_region
      _
    $region29: #{naive_lstm_cell.1} parent=1 // pred_fallthru
      _
    %123 = vsyncpa [#allocation3], 1

</llo_original>
